<compile_context>
chip_gen: v5e
topology: v5e:2x2
jax: 0.10.0
libtpu: 0.0.40
codegen_flags: <defaults>
</compile_context>

<pallas_src>
import functools

import jax
import jax.numpy as jnp
from jax import lax
from jax.experimental import pallas as pl
from jax.experimental.pallas import tpu as pltpu


def q_kernel(s_ref, a_ref, w1_ref, b1_ref, w2h_ref, w2a_ref, b2_ref,
             w3_ref, b3_ref, o_ref):
    s = s_ref[...]            # (TB, S)
    a = a_ref[...]            # (TB, A)

    # ---- layer 1 (feature-major): h1^T = relu(W1 · s^T + b1) -> (H1, TB) --- MXU
    h1 = lax.dot_general(w1_ref[...], s, (((1,), (1,)), ((), ())),
                         preferred_element_type=jnp.float32)
    h1 = jnp.maximum(h1 + b1_ref[...], 0.0)        # b1: (H1,1), broadcast on lanes

    # ---- layer 2, concat-free: h2^T = relu(W2h·h1^T + W2a·a^T + b2) -> (H2,TB)
    h2 = jnp.dot(w2h_ref[...], h1, preferred_element_type=jnp.float32)
    h2 = h2 + lax.dot_general(w2a_ref[...], a, (((1,), (1,)), ((), ())),
                              preferred_element_type=jnp.float32)
    h2 = jnp.maximum(h2 + b2_ref[...], 0.0)

    # ---- output layer: q^T = W3 · h2^T + b3 ------------------------------
    # w3_ref is (8, H2): row 0 holds the real weights, rows 1..7 are zeros so
    # the MXU operand is sublane-aligned.  Result is already lane-dense.
    q8 = jnp.dot(w3_ref[...], h2, preferred_element_type=jnp.float32)   # (8, TB)
    o_ref[...] = (q8[0:1, :] + b3_ref[0]).astype(o_ref.dtype)


def _round_up(x, m):
    return ((x + m - 1) // m) * m


def _cdiv(a, b):
    return (a + b - 1) // b


@functools.partial(jax.jit, static_argnames=("block_b", "input_dtype"))
def q_forward(state, action, w1, b1, w2, b2, w3, b3, *,
              block_b=2048, input_dtype=None):
    """Fused DDPG critic forward. Returns q of shape (B, 1), float32.

    Parameters use the PyTorch nn.Linear layout:
      w1: (H1, S)      b1: (H1,)
      w2: (H2, H1+A)   b2: (H2,)
      w3: (1, H2)      b3: (1,)
    `input_dtype=jnp.bfloat16` streams state/action (and layer-1/2 weights) in
    bf16 (halves HBM traffic, f32 accumulation kept) — recommended on v5e/v6e.
    """
    B, S = state.shape
    A = action.shape[-1]
    H1 = w1.shape[0]
    H2 = w2.shape[0]

    # Batch tile: lane-dense (multiple of 128); at least 2 grid blocks once
    # B > 128 so both v7x TensorCores get work; for large B size the tile to
    # minimize zero-row padding (e.g. B=600 -> tb=384, not 512).
    if B <= 128:
        tb = 128
    else:
        n_blocks = max(2, _cdiv(B, block_b))
        tb = _round_up(_cdiv(B, n_blocks), 128)
    grid = (_cdiv(B, tb),)
    b_out = grid[0] * tb          # output lanes actually written (>= B)

    # Optional reduced-precision streaming of the batch inputs.
    if input_dtype is not None:
        state = state.astype(input_dtype)
        action = action.astype(input_dtype)
        w1c = w1.astype(input_dtype)
        w2c = w2.astype(input_dtype)
    else:
        w1c = w1.astype(jnp.float32)
        w2c = w2.astype(jnp.float32)

    # Concat-free split of the hidden-layer weights (columns: h1 part | action part).
    w2h = w2c[:, :H1]
    w2a = w2c[:, H1:]

    # Feature-major biases: (H, 1) so the in-kernel broadcast is along lanes.
    b1c = jnp.reshape(b1, (H1, 1)).astype(jnp.float32)
    b2c = jnp.reshape(b2, (H2, 1)).astype(jnp.float32)

    # Final-layer weights zero-padded to 8 sublane rows (row 0 real); b3 in SMEM.
    w3_rows = jnp.zeros((8, H2), jnp.float32).at[0, :].set(
        jnp.reshape(w3, (H2,)).astype(jnp.float32))
    b3_s = jnp.reshape(b3, (1,)).astype(jnp.float32)

    in_bytes = state.dtype.itemsize
    flops = 2 * b_out * (S * H1 + (H1 + A) * H2 + H2)
    bytes_accessed = (in_bytes * (B * S + B * A)              # streamed inputs
                      + in_bytes * (H1 * S + H2 * (H1 + A))   # resident weights
                      + 4 * (H1 + H2 + 8 * H2 + 1)            # biases + w3 rows
                      + 4 * b_out)                            # output

    def resident(arr):
        # Full-array block with a constant index map: DMA'd once, then
        # VMEM-resident across every batch tile.
        return pl.BlockSpec(arr.shape, lambda i: (0,) * arr.ndim)

    out_t = pl.pallas_call(
        q_kernel,
        out_shape=jax.ShapeDtypeStruct((1, b_out), jnp.float32),
        grid=grid,
        in_specs=[
            pl.BlockSpec((tb, S), lambda i: (i, 0)),              # state tile
            pl.BlockSpec((tb, A), lambda i: (i, 0)),              # action tile
            resident(w1c), resident(b1c),
            resident(w2h), resident(w2a), resident(b2c),
            resident(w3_rows),
            pl.BlockSpec(memory_space=pltpu.MemorySpace.SMEM),    # b3 scalar
        ],
        out_specs=pl.BlockSpec((1, tb), lambda i: (0, i)),        # lane-dense
        compiler_params=pltpu.CompilerParams(
            dimension_semantics=("parallel",)),
        cost_estimate=pl.CostEstimate(
            flops=flops, transcendentals=0, bytes_accessed=bytes_accessed),
    )(state, action, w1c, b1c, w2h, w2a, b2c, w3_rows, b3_s)

    # (1, b_out) -> module's (B, 1) layout (cheap slice/reshape).
    return out_t[0, :B][:, None]


def init_linear(key, fan_in, fan_out):
    """torch.nn.Linear default init, PyTorch layout: W (out, in), b (out,)."""
    kw, kb = jax.random.split(key)
    bound = 1.0 / jnp.sqrt(jnp.float32(fan_in))
    w = jax.random.uniform(kw, (fan_out, fan_in), jnp.float32, -bound, bound)
    b = jax.random.uniform(kb, (fan_out,), jnp.float32, -bound, bound)
    return w, b


def reference_forward(state, action, w1, b1, w2, b2, w3, b3):
    h1 = jnp.maximum(state @ w1.T + b1, 0.0)
    cat = jnp.concatenate([h1, action], axis=1)
    h2 = jnp.maximum(cat @ w2.T + b2, 0.0)
    return h2 @ w3.T + b3


if __name__ == "__main__":
    # Small shapes consistent with the module's forward.
    batch = 8
    state_dims = 16
    action_dims = 4
    hidden_dims = (32, 32)

    key = jax.random.PRNGKey(0)
    k_s, k_a, k1, k2, k3 = jax.random.split(key, 5)

    state = jax.random.normal(k_s, (batch, state_dims), jnp.float32)
    action = jax.random.normal(k_a, (batch, action_dims), jnp.float32)

    # input_layer: Linear(state_dims -> H1)
    w1, b1 = init_linear(k1, state_dims, hidden_dims[0])
    # hidden_layer: Linear(H1 + action_dims -> H2)
    w2, b2 = init_linear(k2, hidden_dims[0] + action_dims, hidden_dims[1])
    # output_layer: Linear(H2 -> 1)
    w3, b3 = init_linear(k3, hidden_dims[1], 1)

    # Small-batch (single 128-lane tile, partial input block) check.
    out = jax.block_until_ready(
        q_forward(state, action, w1, b1, w2, b2, w3, b3))
    ref = reference_forward(state, action, w1, b1, w2, b2, w3, b3)
    assert out.shape == (batch, 1)
    assert jnp.allclose(out, ref, atol=2e-4, rtol=2e-4)

    # Larger batch: >=2 grid blocks (both v7x cores), partial last input block,
    # no jnp.pad HBM copy.
    big = 600
    kbs, kba = jax.random.split(jax.random.PRNGKey(1))
    state_b = jax.random.normal(kbs, (big, state_dims), jnp.float32)
    action_b = jax.random.normal(kba, (big, action_dims), jnp.float32)
    out_b = jax.block_until_ready(
        q_forward(state_b, action_b, w1, b1, w2, b2, w3, b3))
    ref_b = reference_forward(state_b, action_b, w1, b1, w2, b2, w3, b3)
    assert out_b.shape == (big, 1)
    assert jnp.allclose(out_b, ref_b, atol=2e-4, rtol=2e-4)

    # bf16-streamed variant (HBM-traffic halving on v5e/v6e); loose tolerance.
    out_bf = jax.block_until_ready(
        q_forward(state_b, action_b, w1, b1, w2, b2, w3, b3,
                  input_dtype=jnp.bfloat16))
    assert out_bf.shape == (big, 1)
    assert jnp.allclose(out_bf, ref_b, atol=1e-1, rtol=1e-1)

    print("KERNEL_OK")
</pallas_src>

<mosaic_0001>
module attributes {stable_mosaic.version = 11 : i64} {
  func.func @q_kernel(%arg0: i32, %arg1: memref<128x16xf32, #tpu.memory_space<vmem>>, %arg2: memref<128x4xf32, #tpu.memory_space<vmem>>, %arg3: memref<32x16xf32, #tpu.memory_space<vmem>>, %arg4: memref<32x1xf32, #tpu.memory_space<vmem>>, %arg5: memref<32x32xf32, #tpu.memory_space<vmem>>, %arg6: memref<32x4xf32, #tpu.memory_space<vmem>>, %arg7: memref<32x1xf32, #tpu.memory_space<vmem>>, %arg8: memref<8x32xf32, #tpu.memory_space<vmem>>, %arg9: memref<1xf32, #tpu.memory_space<smem>>, %arg10: memref<1x128xf32, #tpu.memory_space<vmem>>) attributes {dimension_semantics = [#tpu.dimension_semantics<parallel>], iteration_bounds = array<i64: 1>, scalar_prefetch = 0 : i64, scratch_operands = 0 : i64, tpu.core_type = #tpu.core_type<tc>, window_params = [{transform_indices = @transform_0, window_bounds = array<i64: 128, 16>}, {transform_indices = @transform_1, window_bounds = array<i64: 128, 4>}, {pipeline_mode = #tpu.pipeline_mode<synchronous>, transform_indices = @transform_2, window_bounds = array<i64: 32, 16>}, {pipeline_mode = #tpu.pipeline_mode<synchronous>, transform_indices = @transform_3, window_bounds = array<i64: 32, 1>}, {pipeline_mode = #tpu.pipeline_mode<synchronous>, transform_indices = @transform_4, window_bounds = array<i64: 32, 32>}, {pipeline_mode = #tpu.pipeline_mode<synchronous>, transform_indices = @transform_5, window_bounds = array<i64: 32, 4>}, {pipeline_mode = #tpu.pipeline_mode<synchronous>, transform_indices = @transform_6, window_bounds = array<i64: 32, 1>}, {pipeline_mode = #tpu.pipeline_mode<synchronous>, transform_indices = @transform_7, window_bounds = array<i64: 8, 32>}, {transform_indices = @transform_8, window_bounds = array<i64: 1>}, {transform_indices = @transform_9, window_bounds = array<i64: 1, 128>}]} {
    %c0 = arith.constant 0 : index
    %c0_0 = arith.constant 0 : index
    %0 = vector.load %arg1[%c0, %c0_0] : memref<128x16xf32, #tpu.memory_space<vmem>>, vector<128x16xf32>
    %c0_1 = arith.constant 0 : index
    %c0_2 = arith.constant 0 : index
    %1 = vector.load %arg2[%c0_1, %c0_2] : memref<128x4xf32, #tpu.memory_space<vmem>>, vector<128x4xf32>
    %c0_3 = arith.constant 0 : index
    %c0_4 = arith.constant 0 : index
    %2 = vector.load %arg3[%c0_3, %c0_4] : memref<32x16xf32, #tpu.memory_space<vmem>>, vector<32x16xf32>
    %cst = arith.constant dense<0.000000e+00> : vector<32x128xf32>
    %3 = tpu.matmul %2, %0, %cst {dimension_numbers = #tpu.dot_dimension_numbers<[1], [1], [0], [0], [0, 0, 1, 0], [], []>} : vector<32x16xf32>, vector<128x16xf32>, vector<32x128xf32> -> vector<32x128xf32>
    %c0_5 = arith.constant 0 : index
    %c0_6 = arith.constant 0 : index
    %4 = vector.load %arg4[%c0_5, %c0_6] : memref<32x1xf32, #tpu.memory_space<vmem>>, vector<32x1xf32>
    %5 = vector.broadcast %4 : vector<32x1xf32> to vector<32x128xf32>
    %6 = arith.addf %3, %5 : vector<32x128xf32>
    %cst_7 = arith.constant 0.000000e+00 : f32
    %7 = vector.broadcast %cst_7 : f32 to vector<32x128xf32>
    %8 = arith.maximumf %6, %7 : vector<32x128xf32>
    %c0_8 = arith.constant 0 : index
    %c0_9 = arith.constant 0 : index
    %9 = vector.load %arg5[%c0_8, %c0_9] : memref<32x32xf32, #tpu.memory_space<vmem>>, vector<32x32xf32>
    %cst_10 = arith.constant dense<0.000000e+00> : vector<32x128xf32>
    %10 = tpu.matmul %9, %8, %cst_10 {dimension_numbers = #tpu.dot_dimension_numbers<[1], [0], [0], [1], [0, 0, 1, 1], [], []>} : vector<32x32xf32>, vector<32x128xf32>, vector<32x128xf32> -> vector<32x128xf32>
    %c0_11 = arith.constant 0 : index
    %c0_12 = arith.constant 0 : index
    %11 = vector.load %arg6[%c0_11, %c0_12] : memref<32x4xf32, #tpu.memory_space<vmem>>, vector<32x4xf32>
    %cst_13 = arith.constant dense<0.000000e+00> : vector<32x128xf32>
    %12 = tpu.matmul %11, %1, %cst_13 {dimension_numbers = #tpu.dot_dimension_numbers<[1], [1], [0], [0], [0, 0, 1, 0], [], []>} : vector<32x4xf32>, vector<128x4xf32>, vector<32x128xf32> -> vector<32x128xf32>
    %13 = arith.addf %10, %12 : vector<32x128xf32>
    %c0_14 = arith.constant 0 : index
    %c0_15 = arith.constant 0 : index
    %14 = vector.load %arg7[%c0_14, %c0_15] : memref<32x1xf32, #tpu.memory_space<vmem>>, vector<32x1xf32>
    %15 = vector.broadcast %14 : vector<32x1xf32> to vector<32x128xf32>
    %16 = arith.addf %13, %15 : vector<32x128xf32>
    %cst_16 = arith.constant 0.000000e+00 : f32
    %17 = vector.broadcast %cst_16 : f32 to vector<32x128xf32>
    %18 = arith.maximumf %16, %17 : vector<32x128xf32>
    %c0_17 = arith.constant 0 : index
    %c0_18 = arith.constant 0 : index
    %19 = vector.load %arg8[%c0_17, %c0_18] : memref<8x32xf32, #tpu.memory_space<vmem>>, vector<8x32xf32>
    %cst_19 = arith.constant dense<0.000000e+00> : vector<8x128xf32>
    %20 = tpu.matmul %19, %18, %cst_19 {dimension_numbers = #tpu.dot_dimension_numbers<[1], [0], [0], [1], [0, 0, 1, 1], [], []>} : vector<8x32xf32>, vector<32x128xf32>, vector<8x128xf32> -> vector<8x128xf32>
    %21 = vector.extract_strided_slice %20 {offsets = [0, 0], sizes = [1, 128], strides = [1, 1]} : vector<8x128xf32> to vector<1x128xf32>
    %c0_20 = arith.constant 0 : index
    %22 = memref.load %arg9[%c0_20] : memref<1xf32, #tpu.memory_space<smem>>
    %23 = vector.broadcast %22 : f32 to vector<1x128xf32>
    %24 = arith.addf %21, %23 : vector<1x128xf32>
    %c0_21 = arith.constant 0 : index
    %c0_22 = arith.constant 0 : index
    %25 = vector.load %arg10[%c0_21, %c0_22] : memref<1x128xf32, #tpu.memory_space<vmem>>, vector<1x128xf32>
    tpu.vector_store %arg10[%c0_21, %c0_22], %24 {strides = array<i32>} : memref<1x128xf32, #tpu.memory_space<vmem>>, vector<1x128xf32>,
    return
  }
  func.func @transform_0(%arg0: i32) -> (i32, i32) {
    %c0_i32 = arith.constant 0 : i32
    %c0_i32_0 = arith.constant 0 : i32
    return %arg0, %c0_i32 : i32, i32
  }
  func.func @transform_1(%arg0: i32) -> (i32, i32) {
    %c0_i32 = arith.constant 0 : i32
    %c0_i32_0 = arith.constant 0 : i32
    return %arg0, %c0_i32 : i32, i32
  }
  func.func @transform_2(%arg0: i32) -> (i32, i32) {
    %c0_i32 = arith.constant 0 : i32
    %c0_i32_0 = arith.constant 0 : i32
    %c0_i32_1 = arith.constant 0 : i32
    return %c0_i32, %c0_i32_0 : i32, i32
  }
  func.func @transform_3(%arg0: i32) -> (i32, i32) {
    %c0_i32 = arith.constant 0 : i32
    %c0_i32_0 = arith.constant 0 : i32
    %c0_i32_1 = arith.constant 0 : i32
    return %c0_i32, %c0_i32_0 : i32, i32
  }
  func.func @transform_4(%arg0: i32) -> (i32, i32) {
    %c0_i32 = arith.constant 0 : i32
    %c0_i32_0 = arith.constant 0 : i32
    %c0_i32_1 = arith.constant 0 : i32
    return %c0_i32, %c0_i32_0 : i32, i32
  }
  func.func @transform_5(%arg0: i32) -> (i32, i32) {
    %c0_i32 = arith.constant 0 : i32
    %c0_i32_0 = arith.constant 0 : i32
    %c0_i32_1 = arith.constant 0 : i32
    return %c0_i32, %c0_i32_0 : i32, i32
  }
  func.func @transform_6(%arg0: i32) -> (i32, i32) {
    %c0_i32 = arith.constant 0 : i32
    %c0_i32_0 = arith.constant 0 : i32
    %c0_i32_1 = arith.constant 0 : i32
    return %c0_i32, %c0_i32_0 : i32, i32
  }
  func.func @transform_7(%arg0: i32) -> (i32, i32) {
    %c0_i32 = arith.constant 0 : i32
    %c0_i32_0 = arith.constant 0 : i32
    %c0_i32_1 = arith.constant 0 : i32
    return %c0_i32, %c0_i32_0 : i32, i32
  }
  func.func @transform_8(%arg0: i32) -> i32 {
    %c0_i32 = arith.constant 0 : i32
    %c0_i32_0 = arith.constant 0 : i32
    return %c0_i32 : i32
  }
  func.func @transform_9(%arg0: i32) -> (i32, i32) {
    %c0_i32 = arith.constant 0 : i32
    %c0_i32_0 = arith.constant 0 : i32
    return %c0_i32, %arg0 : i32, i32
  }
}

</mosaic_0001>

<llo_original>
// kernel: q_forward.1
$region0: #{q_forward.1}
  #allocation0 [shape = 'u32[]', space=smem, size = 0x4, offset = 0x4, fixed_abs, tag = 'smem constant byte address 0x4 - core index']
  #allocation1 [shape = 'u32[72,128]{1,0:T(1,128)}', space=vmem, size = 0x9000, scoped, tag = 'internal scratch']
  #allocation2 [shape = 'f32[1]{0:T(128)S(6)}', space=smem, size = 0x200, scoped, tag = 'scoped memory for q_forward.1']
  %s0 = inlined_call_operand.vmem [shape: f32[8,16], index: 0, kind: input, shape index: {}]
  %s1 = inlined_call_operand.vmem [shape: f32[8,4], index: 1, kind: input, shape index: {}]
  %s2 = inlined_call_operand.vmem [shape: f32[32,16], index: 2, kind: input, shape index: {}]
  %s3 = inlined_call_operand.vmem [shape: f32[32,1], index: 3, kind: input, shape index: {}]
  %s4 = inlined_call_operand.vmem [shape: f32[32,32], index: 4, kind: input, shape index: {}]
  %s5 = inlined_call_operand.vmem [shape: f32[32,4], index: 5, kind: input, shape index: {}]
  %s6 = inlined_call_operand.vmem [shape: f32[32,1], index: 6, kind: input, shape index: {}]
  %s7 = inlined_call_operand.vmem [shape: f32[8,32], index: 7, kind: input, shape index: {}]
  %s8 = inlined_call_operand.<no memory space> [shape: f32[1], index: 8, kind: input, shape index: {}]
  %s9 = inlined_call_operand.vmem [shape: f32[1,128], index: 9, kind: output, shape index: {}]
  %s10 = sld [smem:[#allocation0]]
  $region46: #{q_forward.1} parent=0
    _
  %s12 = ssub.s32 1, %s10
  %s13 = scalar_select 0, %s12, %s10
  %14 = sst [smem:[#allocation2]] %s8
  // Predicated region
  $region2: #{q_forward.1} parent=0 // pred_check
    _
  $region3: #{q_forward.1} parent=0 // pred_check_branch
    %16 = sbr.rel (0) target = $region5
  $region4: #{q_forward.1} parent=0 // pred_region
    _
  $region5: #{q_forward.1} parent=0 // pred_fallthru
    _
  // Predicated region
  $region6: #{q_forward.1} parent=0 // pred_check
    _
  $region7: #{q_forward.1} parent=0 // pred_check_branch
    %18 = sbr.rel (0) target = $region9
  $region8: #{q_forward.1} parent=0 // pred_region
    _
  $region9: #{q_forward.1} parent=0 // pred_fallthru
    _
  // Predicated region
  $region10: #{q_forward.1} parent=0 // pred_check
    _
  $region11: #{q_forward.1} parent=0 // pred_check_branch
    %20 = sbr.rel (0) target = $region13
  $region12: #{q_forward.1} parent=0 // pred_region
    _
  $region13: #{q_forward.1} parent=0 // pred_fallthru
    _
  // Predicated region
  $region14: #{q_forward.1} parent=0 // pred_check
    _
  $region15: #{q_forward.1} parent=0 // pred_check_branch
    %22 = sbr.rel (0) target = $region17
  $region16: #{q_forward.1} parent=0 // pred_region
    _
  $region17: #{q_forward.1} parent=0 // pred_fallthru
    _
  // Predicated region
  $region18: #{q_forward.1} parent=0 // pred_check
    _
  $region19: #{q_forward.1} parent=0 // pred_check_branch
    %24 = sbr.rel (0) target = $region21
  $region20: #{q_forward.1} parent=0 // pred_region
    _
  $region21: #{q_forward.1} parent=0 // pred_fallthru
    _
  // Predicated region
  $region22: #{q_forward.1} parent=0 // pred_check
    _
  $region23: #{q_forward.1} parent=0 // pred_check_branch
    %26 = sbr.rel (0) target = $region25
  $region24: #{q_forward.1} parent=0 // pred_region
    _
  $region25: #{q_forward.1} parent=0 // pred_fallthru
    _
  // Predicated region
  $region26: #{q_forward.1} parent=0 // pred_check
    _
  $region27: #{q_forward.1} parent=0 // pred_check_branch
    %28 = sbr.rel (0) target = $region29
  $region28: #{q_forward.1} parent=0 // pred_region
    _
  $region29: #{q_forward.1} parent=0 // pred_fallthru
    _
  // Predicated region
  $region30: #{q_forward.1} parent=0 // pred_check
    _
  $region31: #{q_forward.1} parent=0 // pred_check_branch
    %30 = sbr.rel (0) target = $region33
  $region32: #{q_forward.1} parent=0 // pred_region
    _
  $region33: #{q_forward.1} parent=0 // pred_fallthru
    _
  // Predicated region
  $region34: #{q_forward.1} parent=0 // pred_check
    _
  $region35: #{q_forward.1} parent=0 // pred_check_branch
    %32 = sbr.rel (0) target = $region37
  $region36: #{q_forward.1} parent=0 // pred_region
    _
  $region37: #{q_forward.1} parent=0 // pred_fallthru
    _
  %v33 = vld [vmem:[%s0] sm:$0xff]
  %v34 = vld [vmem:[%s0 + $0x8] sm:$0xff]
  %v35 = vld [vmem:[%s0 + $0x10] sm:$0xff]
  %v36 = vld [vmem:[%s0 + $0x18] sm:$0xff]
  %v37 = vld [vmem:[%s0 + $0x20] sm:$0xff]
  %v38 = vld [vmem:[%s0 + $0x28] sm:$0xff]
  %v39 = vld [vmem:[%s0 + $0x30] sm:$0xff]
  %v40 = vld [vmem:[%s0 + $0x38] sm:$0xff]
  %v41 = vld [vmem:[%s0 + $0x40] sm:$0xff]
  %v42 = vld [vmem:[%s0 + $0x48] sm:$0xff]
  %v43 = vld [vmem:[%s0 + $0x50] sm:$0xff]
  %v44 = vld [vmem:[%s0 + $0x58] sm:$0xff]
  %v45 = vld [vmem:[%s0 + $0x60] sm:$0xff]
  %v46 = vld [vmem:[%s0 + $0x68] sm:$0xff]
  %v47 = vld [vmem:[%s0 + $0x70] sm:$0xff]
  %v48 = vld [vmem:[%s0 + $0x78] sm:$0xff]
  %v49 = vld [vmem:[%s1] sm:$0xff]
  %v50 = vld [vmem:[%s1 + $0x8] sm:$0xff]
  %v51 = vld [vmem:[%s1 + $0x10] sm:$0xff]
  %v52 = vld [vmem:[%s1 + $0x18] sm:$0xff]
  %v53 = vld [vmem:[%s1 + $0x20] sm:$0xff]
  %v54 = vld [vmem:[%s1 + $0x28] sm:$0xff]
  %v55 = vld [vmem:[%s1 + $0x30] sm:$0xff]
  %v56 = vld [vmem:[%s1 + $0x38] sm:$0xff]
  %v57 = vld [vmem:[%s1 + $0x40] sm:$0xff]
  %v58 = vld [vmem:[%s1 + $0x48] sm:$0xff]
  %v59 = vld [vmem:[%s1 + $0x50] sm:$0xff]
  %v60 = vld [vmem:[%s1 + $0x58] sm:$0xff]
  %v61 = vld [vmem:[%s1 + $0x60] sm:$0xff]
  %v62 = vld [vmem:[%s1 + $0x68] sm:$0xff]
  %v63 = vld [vmem:[%s1 + $0x70] sm:$0xff]
  %v64 = vld [vmem:[%s1 + $0x78] sm:$0xff]
  %v65 = vld [vmem:[%s2] sm:$0xff]
  %v66 = vld [vmem:[%s2 + $0x8] sm:$0xff]
  %v67 = vld [vmem:[%s2 + $0x10] sm:$0xff]
  %v68 = vld [vmem:[%s2 + $0x18] sm:$0xff]
  %v69 = vld [vmem:[%s3] sm:$0xff]
  %v70 = vld [vmem:[%s3 + $0x8] sm:$0xff]
  %v71 = vld [vmem:[%s3 + $0x10] sm:$0xff]
  %v72 = vld [vmem:[%s3 + $0x18] sm:$0xff]
  %74 = vset.pattern.permute.xlu0 0
  %75 = vperm.xlu0 %74, %v69
  %v76 = vpop.permute.xlu0 %75
  %79 = vset.pattern.permute.xlu0 0
  %80 = vperm.xlu0 %79, %v70
  %v81 = vpop.permute.xlu0 %80
  %84 = vset.pattern.permute.xlu0 0
  %85 = vperm.xlu0 %84, %v71
  %v86 = vpop.permute.xlu0 %85
  %89 = vset.pattern.permute.xlu0 0
  %90 = vperm.xlu0 %89, %v72
  %v91 = vpop.permute.xlu0 %90
  %vm93 = vcmask 130048
  %v95 = vsel %vm93, %v65, 0
  %v98 = vsel %vm93, %v66, 0
  %v101 = vsel %vm93, %v67, 0
  %v104 = vsel %vm93, %v68, 0
  %v107 = vsel %vm93, %v33, 0
  %v110 = vsel %vm93, %v34, 0
  %v113 = vsel %vm93, %v35, 0
  %v116 = vsel %vm93, %v36, 0
  %v119 = vsel %vm93, %v37, 0
  %v122 = vsel %vm93, %v38, 0
  %v125 = vsel %vm93, %v39, 0
  %v128 = vsel %vm93, %v40, 0
  %v131 = vsel %vm93, %v41, 0
  %v134 = vsel %vm93, %v42, 0
  %v137 = vsel %vm93, %v43, 0
  %v140 = vsel %vm93, %v44, 0
  %v143 = vsel %vm93, %v45, 0
  %v146 = vsel %vm93, %v46, 0
  %v149 = vsel %vm93, %v47, 0
  %v152 = vsel %vm93, %v48, 0
  %154 = vmatpush.xpose.msra.mxu0 %v152
  %155 = vmatpush.xpose.msra.mxu0 %v149
  %156 = vmatpush.xpose.msra.mxu0 %v146
  %157 = vmatpush.xpose.msra.mxu0 %v143
  %158 = vmatpush.xpose.msra.mxu0 %v140
  %159 = vmatpush.xpose.msra.mxu0 %v137
  %160 = vmatpush.xpose.msra.mxu0 %v134
  %161 = vmatpush.xpose.msra.mxu0 %v131
  %162 = vmatpush.xpose.msra.mxu0 %v128
  %163 = vmatpush.xpose.msra.mxu0 %v125
  %164 = vmatpush.xpose.msra.mxu0 %v122
  %165 = vmatpush.xpose.msra.mxu0 %v119
  %166 = vmatpush.xpose.msra.mxu0 %v116
  %167 = vmatpush.xpose.msra.mxu0 %v113
  %168 = vmatpush.xpose.msra.mxu0 %v110
  %169 = vmatpush.xpose.msra.mxu0 %v107
  %170 = vmatmul.f32.gmra.mxu0 %v95
  %v171 = vpop.f32.mrf.mxu0
  %v172 = vadd.f32 %v76, %v171
  %173 = vmatmul.f32.gmra.mxu0 %v98
  %v174 = vpop.f32.mrf.mxu0
  %v175 = vadd.f32 %v81, %v174
  %176 = vmatmul.f32.gmra.mxu0 %v101
  %v177 = vpop.f32.mrf.mxu0
  %v178 = vadd.f32 %v86, %v177
  %179 = vmatmul.f32.gmra.mxu0 %v104
  %v180 = vpop.f32.mrf.mxu0
  %v181 = vadd.f32 %v91, %v180
  %182 = vdwg.mxu0
  %v183 = vmax.f32 %v172, 0.0
  %v184 = vmax.f32 %v175, 0.0
  %v185 = vmax.f32 %v178, 0.0
  %v186 = vmax.f32 %v181, 0.0
  %v187 = vld [vmem:[%s4] sm:$0xff]
  %v188 = vld [vmem:[%s4 + $0x8] sm:$0xff]
  %v189 = vld [vmem:[%s4 + $0x10] sm:$0xff]
  %v190 = vld [vmem:[%s4 + $0x18] sm:$0xff]
  %v191 = vld [vmem:[%s5] sm:$0xff]
  %v192 = vld [vmem:[%s5 + $0x8] sm:$0xff]
  %v193 = vld [vmem:[%s5 + $0x10] sm:$0xff]
  %v194 = vld [vmem:[%s5 + $0x18] sm:$0xff]
  %vm195 = vcmask 31744
  %v197 = vsel %vm195, %v191, 0
  %v200 = vsel %vm195, %v192, 0
  %v203 = vsel %vm195, %v193, 0
  %v206 = vsel %vm195, %v194, 0
  %v209 = vsel %vm195, %v49, 0
  %v212 = vsel %vm195, %v50, 0
  %v215 = vsel %vm195, %v51, 0
  %v218 = vsel %vm195, %v52, 0
  %v221 = vsel %vm195, %v53, 0
  %v224 = vsel %vm195, %v54, 0
  %v227 = vsel %vm195, %v55, 0
  %v230 = vsel %vm195, %v56, 0
  %v233 = vsel %vm195, %v57, 0
  %v236 = vsel %vm195, %v58, 0
  %v239 = vsel %vm195, %v59, 0
  %v242 = vsel %vm195, %v60, 0
  %v245 = vsel %vm195, %v61, 0
  %v248 = vsel %vm195, %v62, 0
  %v251 = vsel %vm195, %v63, 0
  %v254 = vsel %vm195, %v64, 0
  %256 = vmatpush.xpose.msra.mxu0 %v254
  %257 = vmatpush.xpose.msra.mxu0 %v251
  %258 = vmatpush.xpose.msra.mxu0 %v248
  %259 = vmatpush.xpose.msra.mxu0 %v245
  %260 = vmatpush.xpose.msra.mxu0 %v242
  %261 = vmatpush.xpose.msra.mxu0 %v239
  %262 = vmatpush.xpose.msra.mxu0 %v236
  %263 = vmatpush.xpose.msra.mxu0 %v233
  %264 = vmatpush.xpose.msra.mxu0 %v230
  %265 = vmatpush.xpose.msra.mxu0 %v227
  %266 = vmatpush.xpose.msra.mxu0 %v224
  %267 = vmatpush.xpose.msra.mxu0 %v221
  %268 = vmatpush.xpose.msra.mxu0 %v218
  %269 = vmatpush.xpose.msra.mxu0 %v215
  %270 = vmatpush.xpose.msra.mxu0 %v212
  %271 = vmatpush.xpose.msra.mxu0 %v209
  %272 = vmatmul.f32.gmra.mxu0 %v197
  %v273 = vpop.f32.mrf.mxu0
  %v274 = vadd.f32 0.0, %v273
  %275 = vmatmul.f32.gmra.mxu0 %v200
  %v276 = vpop.f32.mrf.mxu0
  %v277 = vadd.f32 0.0, %v276
  %278 = vmatmul.f32.gmra.mxu0 %v203
  %v279 = vpop.f32.mrf.mxu0
  %v280 = vadd.f32 0.0, %v279
  %281 = vmatmul.f32.gmra.mxu0 %v206
  %v282 = vpop.f32.mrf.mxu0
  %v283 = vadd.f32 0.0, %v282
  %284 = vdwg.mxu0
  %vm285 = vcmask 261120
  %v287 = vsel %vm285, %v187, 0
  %v290 = vsel %vm285, %v188, 0
  %v293 = vsel %vm285, %v189, 0
  %v296 = vsel %vm285, %v190, 0
  %298 = vmatpush.msra.mxu0 0.0
  %299 = vmatpush.msra.mxu0 0.0
  %300 = vmatpush.msra.mxu0 0.0
  %301 = vmatpush.msra.mxu0 0.0
  %302 = vmatpush.msra.mxu0 0.0
  %303 = vmatpush.msra.mxu0 0.0
  %304 = vmatpush.msra.mxu0 0.0
  %305 = vmatpush.msra.mxu0 0.0
  %306 = vmatpush.msra.mxu0 0.0
  %307 = vmatpush.msra.mxu0 0.0
  %308 = vmatpush.msra.mxu0 0.0
  %309 = vmatpush.msra.mxu0 0.0
  %310 = vmatpush.msra.mxu0 %v186
  %311 = vmatpush.msra.mxu0 %v185
  %312 = vmatpush.msra.mxu0 %v184
  %313 = vmatpush.msra.mxu0 %v183
  %314 = vmatmul.f32.gmra.mxu0 %v287
  %v315 = vpop.f32.mrf.mxu0
  %v316 = vadd.f32 %v274, %v315
  %317 = vmatmul.f32.gmra.mxu0 %v290
  %v318 = vpop.f32.mrf.mxu0
  %v319 = vadd.f32 %v277, %v318
  %320 = vmatmul.f32.gmra.mxu0 %v293
  %v321 = vpop.f32.mrf.mxu0
  %v322 = vadd.f32 %v280, %v321
  %323 = vmatmul.f32.gmra.mxu0 %v296
  %v324 = vpop.f32.mrf.mxu0
  %v325 = vadd.f32 %v283, %v324
  %326 = vdwg.mxu0
  %v327 = vld [vmem:[%s6] sm:$0xff]
  %v328 = vld [vmem:[%s6 + $0x8] sm:$0xff]
  %v329 = vld [vmem:[%s6 + $0x10] sm:$0xff]
  %v330 = vld [vmem:[%s6 + $0x18] sm:$0xff]
  %332 = vset.pattern.permute.xlu0 0
  %333 = vperm.xlu0 %332, %v327
  %v334 = vpop.permute.xlu0 %333
  %337 = vset.pattern.permute.xlu0 0
  %338 = vperm.xlu0 %337, %v328
  %v339 = vpop.permute.xlu0 %338
  %342 = vset.pattern.permute.xlu0 0
  %343 = vperm.xlu0 %342, %v329
  %v344 = vpop.permute.xlu0 %343
  %347 = vset.pattern.permute.xlu0 0
  %348 = vperm.xlu0 %347, %v330
  %v349 = vpop.permute.xlu0 %348
  %v351 = vadd.f32 %v316, %v334
  %v352 = vadd.f32 %v319, %v339
  %v353 = vadd.f32 %v322, %v344
  %v354 = vadd.f32 %v325, %v349
  %v355 = vmax.f32 %v351, 0.0
  %v356 = vmax.f32 %v352, 0.0
  %v357 = vmax.f32 %v353, 0.0
  %v358 = vmax.f32 %v354, 0.0
  %v359 = vld [vmem:[%s7] sm:$0xff]
  %v361 = vsel %vm285, %v359, 0
  %363 = vmatpush.msra.mxu0 0.0
  %364 = vmatpush.msra.mxu0 0.0
  %365 = vmatpush.msra.mxu0 0.0
  %366 = vmatpush.msra.mxu0 0.0
  %367 = vmatpush.msra.mxu0 0.0
  %368 = vmatpush.msra.mxu0 0.0
  %369 = vmatpush.msra.mxu0 0.0
  %370 = vmatpush.msra.mxu0 0.0
  %371 = vmatpush.msra.mxu0 0.0
  %372 = vmatpush.msra.mxu0 0.0
  %373 = vmatpush.msra.mxu0 0.0
  %374 = vmatpush.msra.mxu0 0.0
  %375 = vmatpush.msra.mxu0 %v358
  %376 = vmatpush.msra.mxu0 %v357
  %377 = vmatpush.msra.mxu0 %v356
  %378 = vmatpush.msra.mxu0 %v355
  %379 = vmatmul.f32.gmra.mxu0 %v361
  %v380 = vpop.f32.mrf.mxu0
  %v381 = vadd.f32 0.0, %v380
  %382 = vdwg.mxu0
  %s383 = sld [smem:[#allocation2]]
  %v384 = vstv %s383
  %v385 = vadd.f32 %v381, %v384
  %386 = vst [vmem:[%s9] sm:$0x1] %v385
  // Predicated region
  $region38: #{q_forward.1} parent=0 // pred_check
    _
  $region39: #{q_forward.1} parent=0 // pred_check_branch
    %388 = sbr.rel (0) target = $region41
  $region40: #{q_forward.1} parent=0 // pred_region
    _
  $region41: #{q_forward.1} parent=0 // pred_fallthru
    _
  // Predicated region
  $region42: #{q_forward.1} parent=0 // pred_check
    _
  $region43: #{q_forward.1} parent=0 // pred_check_branch
    %390 = sbr.rel (0) target = $region45
  $region44: #{q_forward.1} parent=0 // pred_region
    _
  $region45: #{q_forward.1} parent=0 // pred_fallthru
    _

</llo_original>
